<compile_context>
chip_gen: v6e
topology: v6e:2x2x1
jax: 0.10.0
libtpu: 0.0.40
codegen_flags: <defaults>
</compile_context>

<pallas_src>
import functools

import jax
import jax.numpy as jnp
from jax.experimental import pallas as pl
from jax.experimental.pallas import tpu as pltpu


def _round_up(n, m):
    return ((n + m - 1) // m) * m


def _cdiv(a, b):
    return (a + b - 1) // b


def _choose_tile(B, block_b):
    """Batch tile: full batch if it fits; otherwise a 16-multiple tile, halved (>=128)
    until the grid has >= 4 steps (2 per v7x TensorCore)."""
    if B <= block_b:
        return B
    bb = _round_up(block_b, 16)
    while bb >= 256 and _cdiv(B, bb) < 4:
        bb //= 2
    return bb


def _disc_kernel(x_ref, w1_ref, b1_ref, w2_ref, b2_ref, o_ref):
    # Layer 1 on the MXU: cast the streamed activations to bf16 in-kernel (no HBM round
    # trip in the wrapper), bf16 x bf16 matmul with f32 accumulation.
    x = x_ref[...].astype(jnp.bfloat16)
    h = jnp.dot(x, w1_ref[...], preferred_element_type=jnp.float32)
    h = h + b1_ref[...]
    # LeakyReLU(negative_slope=0.1) on the VPU.
    h = jnp.where(h > 0, h, 0.1 * h)
    # Layer 2 (out_features = 1): keep it off the MXU — broadcast multiply by the (1, 128)
    # weight row (VPU) + cross-lane reduction (XLU); b2 is a scalar read from SMEM.
    y = jnp.sum(h * w2_ref[...], axis=-1, keepdims=True) + b2_ref[0, 0]
    # Numerically stable sigmoid: exp(-|y|) never overflows; exp and the approximate
    # reciprocal both issue on the otherwise-idle EUP slot.
    z = jnp.exp(-jnp.abs(y))
    inv = pl.reciprocal(1.0 + z, approx=True)
    o_ref[...] = jnp.where(y >= 0, inv, z * inv).astype(o_ref.dtype)


def prepare_params(w1, b1, w2, b2):
    """One-time parameter prep (do NOT call per step): bf16 W1, (1,H) b1, pre-transposed
    (1,H) W2 row, (1,1) b2. Accepts PyTorch-style (H,)/(1,) bias shapes."""
    H = w1.shape[1]
    return (
        w1.astype(jnp.bfloat16),
        jnp.reshape(b1.astype(jnp.float32), (1, H)),
        jnp.reshape(w2.astype(jnp.float32).T, (1, H)),
        jnp.reshape(b2.astype(jnp.float32), (1, 1)),
    )


@functools.partial(jax.jit, static_argnames=("block_b",))
def discriminator_forward(x, w1_bf, b1, w2_row, b2, *, block_b=256):
    """x: (B, F) float32 or bfloat16. Params from prepare_params. Returns (B, 1) f32 in [0, 1]."""
    B, F = x.shape
    H = w1_bf.shape[1]           # 128

    bb = _choose_tile(B, block_b)
    grid = (_cdiv(B, bb),)       # non-divisible last block: Pallas masks OOB writes

    cost = pl.CostEstimate(
        flops=2 * B * F * H + 2 * B * H,
        transcendentals=B,
        bytes_accessed=B * F * x.dtype.itemsize + F * H * 2 + 2 * H * 4 + 4 + B * 4,
    )

    out = pl.pallas_call(
        _disc_kernel,
        out_shape=jax.ShapeDtypeStruct((B, 1), jnp.float32),
        grid_spec=pltpu.PrefetchScalarGridSpec(
            num_scalar_prefetch=0,
            grid=grid,
            in_specs=[
                # Batch-tiled activations: the only streamed operand (default double-buffer).
                pl.BlockSpec((bb, F), lambda i: (i, 0)),
                # Weights / biases: constant index -> resident in VMEM across the grid.
                pl.BlockSpec((F, H), lambda i: (0, 0)),
                pl.BlockSpec((1, H), lambda i: (0, 0)),
                pl.BlockSpec((1, H), lambda i: (0, 0)),
                # b2 is a single scalar -> SMEM, read as b2_ref[0, 0].
                pl.BlockSpec(memory_space=pltpu.MemorySpace.SMEM),
            ],
            out_specs=pl.BlockSpec((bb, 1), lambda i: (i, 0)),
        ),
        compiler_params=pltpu.CompilerParams(
            dimension_semantics=("parallel",)),
        cost_estimate=cost,
    )(x, w1_bf, b1, w2_row, b2)

    return out


def init_params(key, in_features, hidden=128, out_features=1):
    """PyTorch nn.Linear default init: U(-1/sqrt(fan_in), 1/sqrt(fan_in)) for weight and bias.
    Returned in PyTorch-style shapes (bias as (H,) / (O,)); prepare_params reshapes them."""
    k1, k2, k3, k4 = jax.random.split(key, 4)
    bound1 = 1.0 / jnp.sqrt(in_features)
    bound2 = 1.0 / jnp.sqrt(hidden)
    w1 = jax.random.uniform(k1, (in_features, hidden), jnp.float32, -bound1, bound1)
    b1 = jax.random.uniform(k2, (hidden,), jnp.float32, -bound1, bound1)
    w2 = jax.random.uniform(k3, (hidden, out_features), jnp.float32, -bound2, bound2)
    b2 = jax.random.uniform(k4, (out_features,), jnp.float32, -bound2, bound2)
    return w1, b1, w2, b2


def reference_forward(x, w1, b1, w2, b2):
    h = x @ w1 + b1
    h = jnp.where(h > 0, h, 0.1 * h)
    y = h @ w2 + b2
    return jax.nn.sigmoid(y)


if __name__ == "__main__":
    key = jax.random.PRNGKey(0)
    k_x, k_p = jax.random.split(key)

    # GAN discriminator on flattened MNIST-sized inputs: in_features = 28*28 = 784.
    # batch=256 with block_b=128 -> grid of 2 pipelined, megacore-parallel steps.
    batch, in_features = 256, 784
    x = jax.random.normal(k_x, (batch, in_features), jnp.float32)
    w1, b1, w2, b2 = init_params(k_p, in_features)

    params = prepare_params(w1, b1, w2, b2)          # one-time, outside the hot loop
    out = discriminator_forward(x, *params, block_b=128)
    out = jax.block_until_ready(out)

    ref = reference_forward(x, w1, b1, w2, b2)
    assert out.shape == (batch, 1)
    assert bool(jnp.all(jnp.isfinite(out)))
    # bf16 activations/weights + approx reciprocal -> relaxed tolerance vs f32 reference.
    assert jnp.allclose(out, ref, atol=2e-2, rtol=0), (
        f"mismatch vs reference, max abs diff = {jnp.max(jnp.abs(out - ref))}")

    print("KERNEL_OK")
</pallas_src>

<mosaic_0001>
module attributes {stable_mosaic.version = 11 : i64} {
  func.func @_disc_kernel(%arg0: i32, %arg1: memref<128x784xf32, #tpu.memory_space<vmem>>, %arg2: memref<784x128xbf16, #tpu.memory_space<vmem>>, %arg3: memref<1x128xf32, #tpu.memory_space<vmem>>, %arg4: memref<1x128xf32, #tpu.memory_space<vmem>>, %arg5: memref<1x1xf32, #tpu.memory_space<smem>>, %arg6: memref<128x1xf32, #tpu.memory_space<vmem>>) attributes {dimension_semantics = [#tpu.dimension_semantics<parallel>], iteration_bounds = array<i64: 2>, scalar_prefetch = 0 : i64, scratch_operands = 0 : i64, tpu.core_type = #tpu.core_type<tc>, window_params = [{transform_indices = @transform_0, window_bounds = array<i64: 128, 784>}, {pipeline_mode = #tpu.pipeline_mode<synchronous>, transform_indices = @transform_1, window_bounds = array<i64: 784, 128>}, {pipeline_mode = #tpu.pipeline_mode<synchronous>, transform_indices = @transform_2, window_bounds = array<i64: 1, 128>}, {pipeline_mode = #tpu.pipeline_mode<synchronous>, transform_indices = @transform_3, window_bounds = array<i64: 1, 128>}, {transform_indices = @transform_4, window_bounds = array<i64: 1, 1>}, {transform_indices = @transform_5, window_bounds = array<i64: 128, 1>}]} {
    %c0 = arith.constant 0 : index
    %c0_0 = arith.constant 0 : index
    %0 = vector.load %arg1[%c0, %c0_0] : memref<128x784xf32, #tpu.memory_space<vmem>>, vector<128x784xf32>
    %1 = arith.truncf %0 : vector<128x784xf32> to vector<128x784xbf16>
    %c0_1 = arith.constant 0 : index
    %c0_2 = arith.constant 0 : index
    %2 = vector.load %arg2[%c0_1, %c0_2] : memref<784x128xbf16, #tpu.memory_space<vmem>>, vector<784x128xbf16>
    %cst = arith.constant dense<0.000000e+00> : vector<128x128xf32>
    %3 = tpu.matmul %1, %2, %cst {dimension_numbers = #tpu.dot_dimension_numbers<[1], [0], [0], [1], [0, 0, 1, 1], [], []>} : vector<128x784xbf16>, vector<784x128xbf16>, vector<128x128xf32> -> vector<128x128xf32>
    %c0_3 = arith.constant 0 : index
    %c0_4 = arith.constant 0 : index
    %4 = vector.load %arg3[%c0_3, %c0_4] : memref<1x128xf32, #tpu.memory_space<vmem>>, vector<1x128xf32>
    %5 = vector.broadcast %4 : vector<1x128xf32> to vector<128x128xf32>
    %6 = arith.addf %3, %5 : vector<128x128xf32>
    %cst_5 = arith.constant 0.000000e+00 : f32
    %7 = vector.broadcast %cst_5 : f32 to vector<128x128xf32>
    %8 = arith.cmpf ogt, %6, %7 : vector<128x128xf32>
    %cst_6 = arith.constant 1.000000e-01 : f32
    %9 = vector.broadcast %cst_6 : f32 to vector<128x128xf32>
    %10 = arith.mulf %9, %6 : vector<128x128xf32>
    %11 = arith.select %8, %6, %10 : vector<128x128xi1>, vector<128x128xf32>
    %c0_7 = arith.constant 0 : index
    %c0_8 = arith.constant 0 : index
    %12 = vector.load %arg4[%c0_7, %c0_8] : memref<1x128xf32, #tpu.memory_space<vmem>>, vector<1x128xf32>
    %13 = vector.broadcast %12 : vector<1x128xf32> to vector<128x128xf32>
    %14 = arith.mulf %11, %13 : vector<128x128xf32>
    %cst_9 = arith.constant dense<0.000000e+00> : vector<128xf32>
    %15 = vector.multi_reduction <add>, %14, %cst_9 [1] : vector<128x128xf32> to vector<128xf32>
    %16 = vector.shape_cast %15 : vector<128xf32> to vector<128x1xf32>
    %c0_10 = arith.constant 0 : index
    %c0_11 = arith.constant 0 : index
    %17 = memref.load %arg5[%c0_10, %c0_11] : memref<1x1xf32, #tpu.memory_space<smem>>
    %18 = vector.broadcast %17 : f32 to vector<128x1xf32>
    %19 = arith.addf %16, %18 : vector<128x1xf32>
    %20 = math.absf %19 : vector<128x1xf32>
    %cst_12 = arith.constant 0.000000e+00 : f32
    %21 = vector.broadcast %cst_12 : f32 to vector<128x1xf32>
    %22 = arith.subf %21, %20 : vector<128x1xf32>
    %23 = math.exp %22 : vector<128x1xf32>
    %cst_13 = arith.constant 1.000000e+00 : f32
    %24 = vector.broadcast %cst_13 : f32 to vector<128x1xf32>
    %25 = arith.addf %24, %23 : vector<128x1xf32>
    %26 = tpu.reciprocal %25 {approx = true} : vector<128x1xf32> -> vector<128x1xf32>
    %cst_14 = arith.constant 0.000000e+00 : f32
    %27 = vector.broadcast %cst_14 : f32 to vector<128x1xf32>
    %28 = arith.cmpf oge, %19, %27 : vector<128x1xf32>
    %29 = arith.mulf %23, %26 : vector<128x1xf32>
    %30 = arith.select %28, %26, %29 : vector<128x1xi1>, vector<128x1xf32>
    %c0_15 = arith.constant 0 : index
    %c0_16 = arith.constant 0 : index
    %31 = vector.load %arg6[%c0_15, %c0_16] : memref<128x1xf32, #tpu.memory_space<vmem>>, vector<128x1xf32>
    tpu.vector_store %arg6[%c0_15, %c0_16], %30 {strides = array<i32>} : memref<128x1xf32, #tpu.memory_space<vmem>>, vector<128x1xf32>,
    return
  }
  func.func @transform_0(%arg0: i32) -> (i32, i32) {
    %c0_i32 = arith.constant 0 : i32
    %c0_i32_0 = arith.constant 0 : i32
    return %arg0, %c0_i32 : i32, i32
  }
  func.func @transform_1(%arg0: i32) -> (i32, i32) {
    %c0_i32 = arith.constant 0 : i32
    %c0_i32_0 = arith.constant 0 : i32
    %c0_i32_1 = arith.constant 0 : i32
    return %c0_i32, %c0_i32_0 : i32, i32
  }
  func.func @transform_2(%arg0: i32) -> (i32, i32) {
    %c0_i32 = arith.constant 0 : i32
    %c0_i32_0 = arith.constant 0 : i32
    %c0_i32_1 = arith.constant 0 : i32
    return %c0_i32, %c0_i32_0 : i32, i32
  }
  func.func @transform_3(%arg0: i32) -> (i32, i32) {
    %c0_i32 = arith.constant 0 : i32
    %c0_i32_0 = arith.constant 0 : i32
    %c0_i32_1 = arith.constant 0 : i32
    return %c0_i32, %c0_i32_0 : i32, i32
  }
  func.func @transform_4(%arg0: i32) -> (i32, i32) {
    %c0_i32 = arith.constant 0 : i32
    %c0_i32_0 = arith.constant 0 : i32
    %c0_i32_1 = arith.constant 0 : i32
    return %c0_i32, %c0_i32_0 : i32, i32
  }
  func.func @transform_5(%arg0: i32) -> (i32, i32) {
    %c0_i32 = arith.constant 0 : i32
    %c0_i32_0 = arith.constant 0 : i32
    return %arg0, %c0_i32 : i32, i32
  }
}

</mosaic_0001>

<llo_original>
// kernel: discriminator_forward.1
$region0: #{discriminator_forward.1}
  #allocation0 [shape = 'u32[]', space=smem, size = 0x4, offset = 0x4, fixed_abs, tag = 'smem constant byte address 0x4 - core index']
  #allocation1 [shape = 'u32[144,128]{1,0:T(1,128)}', space=vmem, size = 0x12000, scoped, tag = 'internal scratch']
  #allocation2 [shape = 'f32[1,1]{1,0:T(1,128)S(6)}', space=smem, size = 0x200, scoped, tag = 'scoped memory for discriminator_forward.1']
  %s0 = inlined_call_operand.vmem [shape: f32[256,784], index: 0, kind: input, shape index: {}]
  %s1 = inlined_call_operand.vmem [shape: bf16[784,128], index: 1, kind: input, shape index: {}]
  %s2 = inlined_call_operand.vmem [shape: f32[1,128], index: 2, kind: input, shape index: {}]
  %s3 = inlined_call_operand.vmem [shape: f32[1,128], index: 3, kind: input, shape index: {}]
  %s4 = inlined_call_operand.<no memory space> [shape: f32[1,1], index: 4, kind: input, shape index: {}]
  %s5 = inlined_call_operand.vmem [shape: f32[256,1], index: 5, kind: output, shape index: {}]
  %s6 = sld [smem:[#allocation0]]
  $region53: #{discriminator_forward.1} parent=0
    _
  %s8 = ssub.s32 1, %s6
  %s9 = scalar_select 0, %s8, %s6
  %10 = sst [smem:[#allocation2]] %s4
  loop: start=0, step=1, limit=4
  $region2: #{discriminator_forward.1} parent=0 // loop_pre_header
    _
  $region3: #{discriminator_forward.1} parent=0 // loop_header
    %s12 = sphi 0, %s16
    %p13 = scmp.ge.s32.totalorder %s12, 4
    %s22 = sphi 0, %s24
    %s25 = sphi 0, %s22
    %s26 = sphi 0, %s25
    %s42 = sphi 0, %s26
    %s46 = sphi 0, %s46
    %s48 = sphi 0, %s46
    %s49 = sphi 0, %s48
    %s63 = sphi 0, %s49
    %s67 = sphi 0, %s67
    %s69 = sphi 0, %s67
    %s70 = sphi 0, %s69
    %s84 = sphi 0, %s70
    %s88 = sphi 0, %s88
    %s90 = sphi 0, %s88
    %s91 = sphi 0, %s90
    %s105 = sphi 0, %s91
    %s109 = sphi 0, %s109
    %s111 = sphi 0, %s109
    %s112 = sphi 0, %s111
    %s126 = sphi 0, %s112
    %s132 = sphi 0, %s134
    %s135 = sphi 0, %s132
    %s136 = sphi 0, %s135
    %s152 = sphi 0, %s136
  $region4: #{discriminator_forward.1} parent=0 // loop_header_branch
    %15 = sbr.rel (%p13) target = $region8
  $region5: #{discriminator_forward.1} parent=0 // loop_body
    %s17 = ssub.s32 %s12, 1
    %s18 = ssub.s32 %s12, 2
    %s19 = sadd.s32 %s12, 1
    %s20 = ssub.s32 %s12, %s19
    %p21 = scmp.eq.s32.totalorder %s20, 0
    %s23 = sadd.s32 %s22, 1
    %s24 = scalar_select %p21, %s22, %s23
    %p27 = pneg %p21
    %p28 = scmp.eq.s32.totalorder %s12, 1
    %p29 = por %p27, %p28
    %p30 = scmp.ne.s32.totalorder %s22, %s25
    %p31 = scmp.eq.s32.totalorder %s12, 0
    %p32 = por %p30, %p31
    %p33 = scmp.ne.s32.totalorder %s22, %s25
    %p34 = scmp.eq.s32.totalorder %s17, 1
    %p35 = por %p33, %p34
    %p36 = scmp.ne.s32.totalorder %s25, %s26
    %p37 = scmp.eq.s32.totalorder %s17, 0
    %p38 = por %p36, %p37
    %p39 = scmp.ne.s32.totalorder %s25, %s26
    %p40 = scmp.eq.s32.totalorder %s18, 1
    %p41 = por %p39, %p40
    %p43 = scmp.ne.s32.totalorder %s26, %s42
    %p44 = scmp.eq.s32.totalorder %s18, 0
    %p45 = por %p43, %p44
    %s47 = sadd.s32 %s46, 1
    %p50 = scmp.eq.s32.totalorder %s12, 1
    %p51 = scmp.ne.s32.totalorder %s46, %s48
    %p52 = scmp.eq.s32.totalorder %s12, 0
    %p53 = por %p51, %p52
    %p54 = scmp.ne.s32.totalorder %s46, %s48
    %p55 = scmp.eq.s32.totalorder %s17, 1
    %p56 = por %p54, %p55
    %p57 = scmp.ne.s32.totalorder %s48, %s49
    %p58 = scmp.eq.s32.totalorder %s17, 0
    %p59 = por %p57, %p58
    %p60 = scmp.ne.s32.totalorder %s48, %s49
    %p61 = scmp.eq.s32.totalorder %s18, 1
    %p62 = por %p60, %p61
    %p64 = scmp.ne.s32.totalorder %s49, %s63
    %p65 = scmp.eq.s32.totalorder %s18, 0
    %p66 = por %p64, %p65
    %s68 = sadd.s32 %s67, 1
    %p71 = scmp.eq.s32.totalorder %s12, 1
    %p72 = scmp.ne.s32.totalorder %s67, %s69
    %p73 = scmp.eq.s32.totalorder %s12, 0
    %p74 = por %p72, %p73
    %p75 = scmp.ne.s32.totalorder %s67, %s69
    %p76 = scmp.eq.s32.totalorder %s17, 1
    %p77 = por %p75, %p76
    %p78 = scmp.ne.s32.totalorder %s69, %s70
    %p79 = scmp.eq.s32.totalorder %s17, 0
    %p80 = por %p78, %p79
    %p81 = scmp.ne.s32.totalorder %s69, %s70
    %p82 = scmp.eq.s32.totalorder %s18, 1
    %p83 = por %p81, %p82
    %p85 = scmp.ne.s32.totalorder %s70, %s84
    %p86 = scmp.eq.s32.totalorder %s18, 0
    %p87 = por %p85, %p86
    %s89 = sadd.s32 %s88, 1
    %p92 = scmp.eq.s32.totalorder %s12, 1
    %p93 = scmp.ne.s32.totalorder %s88, %s90
    %p94 = scmp.eq.s32.totalorder %s12, 0
    %p95 = por %p93, %p94
    %p96 = scmp.ne.s32.totalorder %s88, %s90
    %p97 = scmp.eq.s32.totalorder %s17, 1
    %p98 = por %p96, %p97
    %p99 = scmp.ne.s32.totalorder %s90, %s91
    %p100 = scmp.eq.s32.totalorder %s17, 0
    %p101 = por %p99, %p100
    %p102 = scmp.ne.s32.totalorder %s90, %s91
    %p103 = scmp.eq.s32.totalorder %s18, 1
    %p104 = por %p102, %p103
    %p106 = scmp.ne.s32.totalorder %s91, %s105
    %p107 = scmp.eq.s32.totalorder %s18, 0
    %p108 = por %p106, %p107
    %s110 = sadd.s32 %s109, 1
    %p113 = scmp.eq.s32.totalorder %s12, 1
    %p114 = scmp.ne.s32.totalorder %s109, %s111
    %p115 = scmp.eq.s32.totalorder %s12, 0
    %p116 = por %p114, %p115
    %p117 = scmp.ne.s32.totalorder %s109, %s111
    %p118 = scmp.eq.s32.totalorder %s17, 1
    %p119 = por %p117, %p118
    %p120 = scmp.ne.s32.totalorder %s111, %s112
    %p121 = scmp.eq.s32.totalorder %s17, 0
    %p122 = por %p120, %p121
    %p123 = scmp.ne.s32.totalorder %s111, %s112
    %p124 = scmp.eq.s32.totalorder %s18, 1
    %p125 = por %p123, %p124
    %p127 = scmp.ne.s32.totalorder %s112, %s126
    %p128 = scmp.eq.s32.totalorder %s18, 0
    %p129 = por %p127, %p128
    %s130 = ssub.s32 %s12, %s19
    %p131 = scmp.eq.s32.totalorder %s130, 0
    %s133 = sadd.s32 %s132, 1
    %s134 = scalar_select %p131, %s132, %s133
    %p137 = pneg %p131
    %p138 = scmp.eq.s32.totalorder %s12, 1
    %p139 = por %p137, %p138
    %p140 = scmp.ne.s32.totalorder %s132, %s135
    %p141 = scmp.eq.s32.totalorder %s12, 0
    %p142 = por %p140, %p141
    %p143 = scmp.ne.s32.totalorder %s132, %s135
    %p144 = scmp.eq.s32.totalorder %s17, 1
    %p145 = por %p143, %p144
    %p146 = scmp.ne.s32.totalorder %s135, %s136
    %p147 = scmp.eq.s32.totalorder %s17, 0
    %p148 = por %p146, %p147
    %p149 = scmp.ne.s32.totalorder %s135, %s136
    %p150 = scmp.eq.s32.totalorder %s18, 1
    %p151 = por %p149, %p150
    %p153 = scmp.ne.s32.totalorder %s136, %s152
    %p154 = scmp.eq.s32.totalorder %s18, 0
    %p155 = por %p153, %p154
    %p156 = scmp.le.s32.totalorder 1, %s12
    %p157 = scmp.lt.s32.totalorder %s12, 3
    %p158 = pnand %p156, %p157
    %p159 = pneg %p158
    // Predicated region
    $region9: #{discriminator_forward.1} parent=5 // pred_check
      _
    $region10: #{discriminator_forward.1} parent=5 // pred_check_branch
      %161 = sbr.rel (%p158) target = $region12
    $region11: #{discriminator_forward.1} parent=5 // pred_region
      %s162 = ssub.s32 %s12, 1
      // Predicated region
      $region13: #{discriminator_forward.1} parent=11 // pred_check
        %p163 = pneg %p59
      $region14: #{discriminator_forward.1} parent=11 // pred_check_branch
        %165 = sbr.rel (%p163) target = $region16
      $region15: #{discriminator_forward.1} parent=11 // pred_region
        _
      $region16: #{discriminator_forward.1} parent=11 // pred_fallthru
        _
      // Predicated region
      $region17: #{discriminator_forward.1} parent=11 // pred_check
        %p166 = pneg %p80
      $region18: #{discriminator_forward.1} parent=11 // pred_check_branch
        %168 = sbr.rel (%p166) target = $region20
      $region19: #{discriminator_forward.1} parent=11 // pred_region
        _
      $region20: #{discriminator_forward.1} parent=11 // pred_fallthru
        _
      // Predicated region
      $region21: #{discriminator_forward.1} parent=11 // pred_check
        %p169 = pneg %p101
      $region22: #{discriminator_forward.1} parent=11 // pred_check_branch
        %171 = sbr.rel (%p169) target = $region24
      $region23: #{discriminator_forward.1} parent=11 // pred_region
        _
      $region24: #{discriminator_forward.1} parent=11 // pred_fallthru
        _
      // Predicated region
      $region25: #{discriminator_forward.1} parent=11 // pred_check
        %p172 = pneg %p122
      $region26: #{discriminator_forward.1} parent=11 // pred_check_branch
        %174 = sbr.rel (%p172) target = $region28
      $region27: #{discriminator_forward.1} parent=11 // pred_region
        _
      $region28: #{discriminator_forward.1} parent=11 // pred_fallthru
        _
    $region12: #{discriminator_forward.1} parent=5 // pred_fallthru
      _
    %p175 = scmp.lt.s32.totalorder %s12, 2
    // Predicated region
    $region29: #{discriminator_forward.1} parent=5 // pred_check
      %p176 = pneg %p175
    $region30: #{discriminator_forward.1} parent=5 // pred_check_branch
      %178 = sbr.rel (%p176) target = $region32
    $region31: #{discriminator_forward.1} parent=5 // pred_region
      // Predicated region
      $region33: #{discriminator_forward.1} parent=31 // pred_check
        %p179 = pneg %p32
      $region34: #{discriminator_forward.1} parent=31 // pred_check_branch
        %181 = sbr.rel (%p179) target = $region36
      $region35: #{discriminator_forward.1} parent=31 // pred_region
        %s182 = smul.u32 16, %s12
        %p183 = scmp.lt.s32.totalorder %s182, 31
        %s184 = scalar_select %p183, %s182, 31
        %s185 = smul.addr %s184, 7
        %s186 = smul.addr %s185, 8
        %s187 = scalar_lea.vmem %s0, %s186
        %s188 = smul.u32 16, %s12
      $region36: #{discriminator_forward.1} parent=31 // pred_fallthru
        _
    $region32: #{discriminator_forward.1} parent=5 // pred_fallthru
      _
    %p189 = scmp.le.s32.totalorder 1, %s12
    %p190 = scmp.lt.s32.totalorder %s12, 3
    %p191 = pnand %p189, %p190
    %p192 = pneg %p191
    // Predicated region
    $region37: #{discriminator_forward.1} parent=5 // pred_check
      _
    $region38: #{discriminator_forward.1} parent=5 // pred_check_branch
      %194 = sbr.rel (%p191) target = $region40
    $region39: #{discriminator_forward.1} parent=5 // pred_region
      %s195 = ssub.s32 %s12, 1
      %s196 = smul.u32 16, %s17
      %p197 = scmp.lt.s32.totalorder %s196, 31
      %s198 = scalar_select %p197, %s196, 31
      %s199 = smul.addr %s198, 7
      %s200 = smul.addr %s199, 8
      %s201 = scalar_lea.vmem %s0, %s200
      %p202 = pneg %p38
      %p203 = pneg %p35
      %p204 = pneg %p59
      %p205 = pneg %p56
      %p206 = pneg %p80
      %p207 = pneg %p77
      %p208 = pneg %p101
      %p209 = pneg %p98
      %p210 = pneg %p122
      %p211 = pneg %p119
      %p212 = pneg %p148
      %p213 = pneg %p145
      %s214 = smul.u32 16, %s17
      %p215 = scmp.lt.s32.totalorder %s214, 31
      %s216 = scalar_select %p215, %s214, 31
      %s217 = smul.addr %s216, 8
      %s218 = scalar_lea.vmem %s5, %s217
      %s219 = smul.u32 16, %s17
      %p220 = scmp.lt.s32.totalorder %s219, 31
      %s221 = scalar_select %p220, %s219, 31
      %s222 = smul.addr %s221, 7
      %s223 = smul.addr %s222, 8
      %s224 = scalar_lea.vmem %s0, %s223
      %s225 = smul.u32 16, %s17
      %s226 = smul.u32 16, %s17
      %p227 = scmp.lt.s32.totalorder %s226, 31
      %s228 = scalar_select %p227, %s226, 31
      %s229 = smul.addr %s228, 8
      %s230 = scalar_lea.vmem %s5, %s229
      %s231 = smul.u32 16, %s17
      %v233 = vld [vmem:[%s224] sm:$0xff]
      %v234 = vld [vmem:[%s224 + $0x8] sm:$0xff]
      %v235 = vld [vmem:[%s224 + $0x10] sm:$0xff]
      %v236 = vld [vmem:[%s224 + $0x18] sm:$0xff]
      %v237 = vld [vmem:[%s224 + $0x20] sm:$0xff]
      %v238 = vld [vmem:[%s224 + $0x28] sm:$0xff]
      %v239 = vld [vmem:[%s224 + $0x30] sm:$0xff]
      %v240 = vld [vmem:[%s224 + $0x38] sm:$0xff]
      %v241 = vld [vmem:[%s224 + $0x40] sm:$0xff]
      %v242 = vld [vmem:[%s224 + $0x48] sm:$0xff]
      %v243 = vld [vmem:[%s224 + $0x50] sm:$0xff]
      %v244 = vld [vmem:[%s224 + $0x58] sm:$0xff]
      %v245 = vld [vmem:[%s224 + $0x60] sm:$0xff]
      %v246 = vld [vmem:[%s224 + $0x68] sm:$0xff]
      %v247 = vld [vmem:[%s224 + $0x70] sm:$0xff]
      %v248 = vld [vmem:[%s224 + $0x78] sm:$0xff]
      %v249 = vld [vmem:[%s224 + $0x80] sm:$0xff]
      %v250 = vld [vmem:[%s224 + $0x88] sm:$0xff]
      %v251 = vld [vmem:[%s224 + $0x90] sm:$0xff]
      %v252 = vld [vmem:[%s224 + $0x98] sm:$0xff]
      %v253 = vld [vmem:[%s224 + $0xa0] sm:$0xff]
      %v254 = vld [vmem:[%s224 + $0xa8] sm:$0xff]
      %v255 = vld [vmem:[%s224 + $0xb0] sm:$0xff]
      %v256 = vld [vmem:[%s224 + $0xb8] sm:$0xff]
      %v257 = vld [vmem:[%s224 + $0xc0] sm:$0xff]
      %v258 = vld [vmem:[%s224 + $0xc8] sm:$0xff]
      %v259 = vld [vmem:[%s224 + $0xd0] sm:$0xff]
      %v260 = vld [vmem:[%s224 + $0xd8] sm:$0xff]
      %v261 = vld [vmem:[%s224 + $0xe0] sm:$0xff]
      %v262 = vld [vmem:[%s224 + $0xe8] sm:$0xff]
      %v263 = vld [vmem:[%s224 + $0xf0] sm:$0xff]
      %v264 = vld [vmem:[%s224 + $0xf8] sm:$0xff]
      %v265 = vld [vmem:[%s224 + $0x100] sm:$0xff]
      %v266 = vld [vmem:[%s224 + $0x108] sm:$0xff]
      %v267 = vld [vmem:[%s224 + $0x110] sm:$0xff]
      %v268 = vld [vmem:[%s224 + $0x118] sm:$0xff]
      %v269 = vld [vmem:[%s224 + $0x120] sm:$0xff]
      %v270 = vld [vmem:[%s224 + $0x128] sm:$0xff]
      %v271 = vld [vmem:[%s224 + $0x130] sm:$0xff]
      %v272 = vld [vmem:[%s224 + $0x138] sm:$0xff]
      %v273 = vld [vmem:[%s224 + $0x140] sm:$0xff]
      %v274 = vld [vmem:[%s224 + $0x148] sm:$0xff]
      %v275 = vld [vmem:[%s224 + $0x150] sm:$0xff]
      %v276 = vld [vmem:[%s224 + $0x158] sm:$0xff]
      %v277 = vld [vmem:[%s224 + $0x160] sm:$0xff]
      %v278 = vld [vmem:[%s224 + $0x168] sm:$0xff]
      %v279 = vld [vmem:[%s224 + $0x170] sm:$0xff]
      %v280 = vld [vmem:[%s224 + $0x178] sm:$0xff]
      %v281 = vld [vmem:[%s224 + $0x180] sm:$0xff]
      %v282 = vld [vmem:[%s224 + $0x188] sm:$0xff]
      %v283 = vld [vmem:[%s224 + $0x190] sm:$0xff]
      %v284 = vld [vmem:[%s224 + $0x198] sm:$0xff]
      %v285 = vld [vmem:[%s224 + $0x1a0] sm:$0xff]
      %v286 = vld [vmem:[%s224 + $0x1a8] sm:$0xff]
      %v287 = vld [vmem:[%s224 + $0x1b0] sm:$0xff]
      %v288 = vld [vmem:[%s224 + $0x1b8] sm:$0xff]
      %v289 = vld [vmem:[%s224 + $0x1c0] sm:$0xff]
      %v290 = vld [vmem:[%s224 + $0x1c8] sm:$0xff]
      %v291 = vld [vmem:[%s224 + $0x1d0] sm:$0xff]
      %v292 = vld [vmem:[%s224 + $0x1d8] sm:$0xff]
      %v293 = vld [vmem:[%s224 + $0x1e0] sm:$0xff]
      %v294 = vld [vmem:[%s224 + $0x1e8] sm:$0xff]
      %v295 = vld [vmem:[%s224 + $0x1f0] sm:$0xff]
      %v296 = vld [vmem:[%s224 + $0x1f8] sm:$0xff]
      %v297 = vld [vmem:[%s224 + $0x200] sm:$0xff]
      %v298 = vld [vmem:[%s224 + $0x208] sm:$0xff]
      %v299 = vld [vmem:[%s224 + $0x210] sm:$0xff]
      %v300 = vld [vmem:[%s224 + $0x218] sm:$0xff]
      %v301 = vld [vmem:[%s224 + $0x220] sm:$0xff]
      %v302 = vld [vmem:[%s224 + $0x228] sm:$0xff]
      %v303 = vld [vmem:[%s224 + $0x230] sm:$0xff]
      %v304 = vld [vmem:[%s224 + $0x238] sm:$0xff]
      %v305 = vld [vmem:[%s224 + $0x240] sm:$0xff]
      %v306 = vld [vmem:[%s224 + $0x248] sm:$0xff]
      %v307 = vld [vmem:[%s224 + $0x250] sm:$0xff]
      %v308 = vld [vmem:[%s224 + $0x258] sm:$0xff]
      %v309 = vld [vmem:[%s224 + $0x260] sm:$0xff]
      %v310 = vld [vmem:[%s224 + $0x268] sm:$0xff]
      %v311 = vld [vmem:[%s224 + $0x270] sm:$0xff]
      %v312 = vld [vmem:[%s224 + $0x278] sm:$0xff]
      %v313 = vld [vmem:[%s224 + $0x280] sm:$0xff]
      %v314 = vld [vmem:[%s224 + $0x288] sm:$0xff]
      %v315 = vld [vmem:[%s224 + $0x290] sm:$0xff]
      %v316 = vld [vmem:[%s224 + $0x298] sm:$0xff]
      %v317 = vld [vmem:[%s224 + $0x2a0] sm:$0xff]
      %v318 = vld [vmem:[%s224 + $0x2a8] sm:$0xff]
      %v319 = vld [vmem:[%s224 + $0x2b0] sm:$0xff]
      %v320 = vld [vmem:[%s224 + $0x2b8] sm:$0xff]
      %v321 = vld [vmem:[%s224 + $0x2c0] sm:$0xff]
      %v322 = vld [vmem:[%s224 + $0x2c8] sm:$0xff]
      %v323 = vld [vmem:[%s224 + $0x2d0] sm:$0xff]
      %v324 = vld [vmem:[%s224 + $0x2d8] sm:$0xff]
      %v325 = vld [vmem:[%s224 + $0x2e0] sm:$0xff]
      %v326 = vld [vmem:[%s224 + $0x2e8] sm:$0xff]
      %v327 = vld [vmem:[%s224 + $0x2f0] sm:$0xff]
      %v328 = vld [vmem:[%s224 + $0x2f8] sm:$0xff]
      %v329 = vld [vmem:[%s224 + $0x300] sm:$0xff]
      %v330 = vld [vmem:[%s224 + $0x308] sm:$0xff]
      %v331 = vld [vmem:[%s224 + $0x310] sm:$0xff]
      %v332 = vld [vmem:[%s224 + $0x318] sm:$0xff]
      %v333 = vld [vmem:[%s224 + $0x320] sm:$0xff]
      %v334 = vld [vmem:[%s224 + $0x328] sm:$0xff]
      %v335 = vld [vmem:[%s224 + $0x330] sm:$0xff]
      %v336 = vld [vmem:[%s224 + $0x338] sm:$0xff]
      %v337 = vld [vmem:[%s224 + $0x340] sm:$0xff]
      %v338 = vld [vmem:[%s224 + $0x348] sm:$0xff]
      %v339 = vld [vmem:[%s224 + $0x350] sm:$0xff]
      %v340 = vld [vmem:[%s224 + $0x358] sm:$0xff]
      %v341 = vld [vmem:[%s224 + $0x360] sm:$0xff]
      %v342 = vld [vmem:[%s224 + $0x368] sm:$0xff]
      %v343 = vld [vmem:[%s224 + $0x370] sm:$0xff]
      %v344 = vld [vmem:[%s224 + $0x378] sm:$0xff]
      %v345 = vpack.c.bf16 %v240, %v233
      %v346 = vpack.c.bf16 %v241, %v234
      %v347 = vpack.c.bf16 %v242, %v235
      %v348 = vpack.c.bf16 %v243, %v236
      %v349 = vpack.c.bf16 %v244, %v237
      %v350 = vpack.c.bf16 %v245, %v238
      %v351 = vpack.c.bf16 %v246, %v239
      %v352 = vpack.c.bf16 %v254, %v247
      %v353 = vpack.c.bf16 %v255, %v248
      %v354 = vpack.c.bf16 %v256, %v249
      %v355 = vpack.c.bf16 %v257, %v250
      %v356 = vpack.c.bf16 %v258, %v251
      %v357 = vpack.c.bf16 %v259, %v252
      %v358 = vpack.c.bf16 %v260, %v253
      %v359 = vpack.c.bf16 %v268, %v261
      %v360 = vpack.c.bf16 %v269, %v262
      %v361 = vpack.c.bf16 %v270, %v263
      %v362 = vpack.c.bf16 %v271, %v264
      %v363 = vpack.c.bf16 %v272, %v265
      %v364 = vpack.c.bf16 %v273, %v266
      %v365 = vpack.c.bf16 %v274, %v267
      %v366 = vpack.c.bf16 %v282, %v275
      %v367 = vpack.c.bf16 %v283, %v276
      %v368 = vpack.c.bf16 %v284, %v277
      %v369 = vpack.c.bf16 %v285, %v278
      %v370 = vpack.c.bf16 %v286, %v279
      %v371 = vpack.c.bf16 %v287, %v280
      %v372 = vpack.c.bf16 %v288, %v281
      %v373 = vpack.c.bf16 %v296, %v289
      %v374 = vpack.c.bf16 %v297, %v290
      %v375 = vpack.c.bf16 %v298, %v291
      %v376 = vpack.c.bf16 %v299, %v292
      %v377 = vpack.c.bf16 %v300, %v293
      %v378 = vpack.c.bf16 %v301, %v294
      %v379 = vpack.c.bf16 %v302, %v295
      %v380 = vpack.c.bf16 %v310, %v303
      %v381 = vpack.c.bf16 %v311, %v304
      %v382 = vpack.c.bf16 %v312, %v305
      %v383 = vpack.c.bf16 %v313, %v306
      %v384 = vpack.c.bf16 %v314, %v307
      %v385 = vpack.c.bf16 %v315, %v308
      %v386 = vpack.c.bf16 %v316, %v309
      %v387 = vpack.c.bf16 %v324, %v317
      %v388 = vpack.c.bf16 %v325, %v318
      %v389 = vpack.c.bf16 %v326, %v319
      %v390 = vpack.c.bf16 %v327, %v320
      %v391 = vpack.c.bf16 %v328, %v321
      %v392 = vpack.c.bf16 %v329, %v322
      %v393 = vpack.c.bf16 %v330, %v323
      %v394 = vpack.c.bf16 %v338, %v331
      %v395 = vpack.c.bf16 %v339, %v332
      %v396 = vpack.c.bf16 %v340, %v333
      %v397 = vpack.c.bf16 %v341, %v334
      %v398 = vpack.c.bf16 %v342, %v335
      %v399 = vpack.c.bf16 %v343, %v336
      %v400 = vpack.c.bf16 %v344, %v337
      %v401 = vld [vmem:[%s1] sm:$0xf]
      %v402 = vld [vmem:[%s1 + $0x4] sm:$0xf]
      %v403 = vld [vmem:[%s1 + $0x8] sm:$0xf]
      %v404 = vld [vmem:[%s1 + $0xc] sm:$0xf]
      %v405 = vld [vmem:[%s1 + $0x10] sm:$0xf]
      %v406 = vld [vmem:[%s1 + $0x14] sm:$0xf]
      %v407 = vld [vmem:[%s1 + $0x18] sm:$0xf]
      %v408 = vld [vmem:[%s1 + $0x1c] sm:$0xf]
      %v409 = vld [vmem:[%s1 + $0x20] sm:$0xf]
      %v410 = vld [vmem:[%s1 + $0x24] sm:$0xf]
      %v411 = vld [vmem:[%s1 + $0x28] sm:$0xf]
      %v412 = vld [vmem:[%s1 + $0x2c] sm:$0xf]
      %v413 = vld [vmem:[%s1 + $0x30] sm:$0xf]
      %v414 = vld [vmem:[%s1 + $0x34] sm:$0xf]
      %v415 = vld [vmem:[%s1 + $0x38] sm:$0xf]
      %v416 = vld [vmem:[%s1 + $0x3c] sm:$0xf]
      %v417 = vld [vmem:[%s1 + $0x40] sm:$0xf]
      %v418 = vld [vmem:[%s1 + $0x44] sm:$0xf]
      %v419 = vld [vmem:[%s1 + $0x48] sm:$0xf]
      %v420 = vld [vmem:[%s1 + $0x4c] sm:$0xf]
      %v421 = vld [vmem:[%s1 + $0x50] sm:$0xf]
      %v422 = vld [vmem:[%s1 + $0x54] sm:$0xf]
      %v423 = vld [vmem:[%s1 + $0x58] sm:$0xf]
      %v424 = vld [vmem:[%s1 + $0x5c] sm:$0xf]
      %v425 = vld [vmem:[%s1 + $0x60] sm:$0xf]
      %v426 = vld [vmem:[%s1 + $0x64] sm:$0xf]
      %v427 = vld [vmem:[%s1 + $0x68] sm:$0xf]
      %v428 = vld [vmem:[%s1 + $0x6c] sm:$0xf]
      %v429 = vld [vmem:[%s1 + $0x70] sm:$0xf]
      %v430 = vld [vmem:[%s1 + $0x74] sm:$0xf]
      %v431 = vld [vmem:[%s1 + $0x78] sm:$0xf]
      %v432 = vld [vmem:[%s1 + $0x7c] sm:$0xf]
      %v433 = vld [vmem:[%s1 + $0x80] sm:$0xf]
      %v434 = vld [vmem:[%s1 + $0x84] sm:$0xf]
      %v435 = vld [vmem:[%s1 + $0x88] sm:$0xf]
      %v436 = vld [vmem:[%s1 + $0x8c] sm:$0xf]
      %v437 = vld [vmem:[%s1 + $0x90] sm:$0xf]
      %v438 = vld [vmem:[%s1 + $0x94] sm:$0xf]
      %v439 = vld [vmem:[%s1 + $0x98] sm:$0xf]
      %v440 = vld [vmem:[%s1 + $0x9c] sm:$0xf]
      %v441 = vld [vmem:[%s1 + $0xa0] sm:$0xf]
      %v442 = vld [vmem:[%s1 + $0xa4] sm:$0xf]
      %v443 = vld [vmem:[%s1 + $0xa8] sm:$0xf]
      %v444 = vld [vmem:[%s1 + $0xac] sm:$0xf]
      %v445 = vld [vmem:[%s1 + $0xb0] sm:$0xf]
      %v446 = vld [vmem:[%s1 + $0xb4] sm:$0xf]
      %v447 = vld [vmem:[%s1 + $0xb8] sm:$0xf]
      %v448 = vld [vmem:[%s1 + $0xbc] sm:$0xf]
      %v449 = vld [vmem:[%s1 + $0xc0] sm:$0xf]
      %v450 = vld [vmem:[%s1 + $0xc4] sm:$0xf]
      %v451 = vld [vmem:[%s1 + $0xc8] sm:$0xf]
      %v452 = vld [vmem:[%s1 + $0xcc] sm:$0xf]
      %v453 = vld [vmem:[%s1 + $0xd0] sm:$0xf]
      %v454 = vld [vmem:[%s1 + $0xd4] sm:$0xf]
      %v455 = vld [vmem:[%s1 + $0xd8] sm:$0xf]
      %v456 = vld [vmem:[%s1 + $0xdc] sm:$0xf]
      %v457 = vld [vmem:[%s1 + $0xe0] sm:$0xf]
      %v458 = vld [vmem:[%s1 + $0xe4] sm:$0xf]
      %v459 = vld [vmem:[%s1 + $0xe8] sm:$0xf]
      %v460 = vld [vmem:[%s1 + $0xec] sm:$0xf]
      %v461 = vld [vmem:[%s1 + $0xf0] sm:$0xf]
      %v462 = vld [vmem:[%s1 + $0xf4] sm:$0xf]
      %v463 = vld [vmem:[%s1 + $0xf8] sm:$0xf]
      %v464 = vld [vmem:[%s1 + $0xfc] sm:$0xf]
      %v465 = vld [vmem:[%s1 + $0x100] sm:$0xf]
      %v466 = vld [vmem:[%s1 + $0x104] sm:$0xf]
      %v467 = vld [vmem:[%s1 + $0x108] sm:$0xf]
      %v468 = vld [vmem:[%s1 + $0x10c] sm:$0xf]
      %v469 = vld [vmem:[%s1 + $0x110] sm:$0xf]
      %v470 = vld [vmem:[%s1 + $0x114] sm:$0xf]
      %v471 = vld [vmem:[%s1 + $0x118] sm:$0xf]
      %v472 = vld [vmem:[%s1 + $0x11c] sm:$0xf]
      %v473 = vld [vmem:[%s1 + $0x120] sm:$0xf]
      %v474 = vld [vmem:[%s1 + $0x124] sm:$0xf]
      %v475 = vld [vmem:[%s1 + $0x128] sm:$0xf]
      %v476 = vld [vmem:[%s1 + $0x12c] sm:$0xf]
      %v477 = vld [vmem:[%s1 + $0x130] sm:$0xf]
      %v478 = vld [vmem:[%s1 + $0x134] sm:$0xf]
      %v479 = vld [vmem:[%s1 + $0x138] sm:$0xf]
      %v480 = vld [vmem:[%s1 + $0x13c] sm:$0xf]
      %v481 = vld [vmem:[%s1 + $0x140] sm:$0xf]
      %v482 = vld [vmem:[%s1 + $0x144] sm:$0xf]
      %v483 = vld [vmem:[%s1 + $0x148] sm:$0xf]
      %v484 = vld [vmem:[%s1 + $0x14c] sm:$0xf]
      %v485 = vld [vmem:[%s1 + $0x150] sm:$0xf]
      %v486 = vld [vmem:[%s1 + $0x154] sm:$0xf]
      %v487 = vld [vmem:[%s1 + $0x158] sm:$0xf]
      %v488 = vld [vmem:[%s1 + $0x15c] sm:$0xf]
      %v489 = vld [vmem:[%s1 + $0x160] sm:$0xf]
      %v490 = vld [vmem:[%s1 + $0x164] sm:$0xf]
      %v491 = vld [vmem:[%s1 + $0x168] sm:$0xf]
      %v492 = vld [vmem:[%s1 + $0x16c] sm:$0xf]
      %v493 = vld [vmem:[%s1 + $0x170] sm:$0xf]
      %v494 = vld [vmem:[%s1 + $0x174] sm:$0xf]
      %v495 = vld [vmem:[%s1 + $0x178] sm:$0xf]
      %v496 = vld [vmem:[%s1 + $0x17c] sm:$0xf]
      %v497 = vld [vmem:[%s1 + $0x180] sm:$0xf]
      %v498 = vld [vmem:[%s1 + $0x184] sm:$0xf]
      %v499 = vld [vmem:[%s2] sm:$0x1]
      %v501 = vlaneseq
      %v502 = vshrl.u32 %v501, 7
      %v503 = vsub.s32 0, %v502
      %v504 = vrot.slane %v499, %v503
      %v604 = vunpack.c.l.b16 %v401
      %v605 = vunpack.c.l.b16 %v402
      %v606 = vunpack.c.l.b16 %v403
      %v607 = vunpack.c.l.b16 %v404
      %v608 = vunpack.c.l.b16 %v405
      %v609 = vunpack.c.l.b16 %v406
      %v610 = vunpack.c.l.b16 %v407
      %v611 = vunpack.c.l.b16 %v408
      %v612 = vunpack.c.l.b16 %v409
      %v613 = vunpack.c.l.b16 %v410
      %v614 = vunpack.c.l.b16 %v411
      %v615 = vunpack.c.l.b16 %v412
      %v616 = vunpack.c.l.b16 %v413
      %v617 = vunpack.c.l.b16 %v414
      %v618 = vunpack.c.l.b16 %v415
      %v619 = vunpack.c.l.b16 %v416
      %v620 = vunpack.c.l.b16 %v417
      %v621 = vunpack.c.l.b16 %v418
      %v622 = vunpack.c.l.b16 %v419
      %v623 = vunpack.c.l.b16 %v420
      %v624 = vunpack.c.l.b16 %v421
      %v625 = vunpack.c.l.b16 %v422
      %v626 = vunpack.c.l.b16 %v423
      %v627 = vunpack.c.l.b16 %v424
      %v628 = vunpack.c.l.b16 %v425
      %v629 = vunpack.c.l.b16 %v426
      %v630 = vunpack.c.l.b16 %v427
      %v631 = vunpack.c.l.b16 %v428
      %v632 = vunpack.c.l.b16 %v429
      %v633 = vunpack.c.l.b16 %v430
      %v634 = vunpack.c.l.b16 %v431
      %v635 = vunpack.c.l.b16 %v432
      %v636 = vunpack.c.l.b16 %v433
      %v637 = vunpack.c.l.b16 %v434
      %v638 = vunpack.c.l.b16 %v435
      %v639 = vunpack.c.l.b16 %v436
      %v640 = vunpack.c.l.b16 %v437
      %v641 = vunpack.c.l.b16 %v438
      %v642 = vunpack.c.l.b16 %v439
      %v643 = vunpack.c.l.b16 %v440
      %v644 = vunpack.c.l.b16 %v441
      %v645 = vunpack.c.l.b16 %v442
      %v646 = vunpack.c.l.b16 %v443
      %v647 = vunpack.c.l.b16 %v444
      %v648 = vunpack.c.l.b16 %v445
      %v649 = vunpack.c.l.b16 %v446
      %v650 = vunpack.c.l.b16 %v447
      %v651 = vunpack.c.l.b16 %v448
      %v652 = vunpack.c.l.b16 %v449
      %v653 = vunpack.c.l.b16 %v450
      %v654 = vunpack.c.l.b16 %v451
      %v655 = vunpack.c.l.b16 %v452
      %v656 = vunpack.c.l.b16 %v453
      %v657 = vunpack.c.l.b16 %v454
      %v658 = vunpack.c.l.b16 %v455
      %v659 = vunpack.c.l.b16 %v456
      %v660 = vunpack.c.l.b16 %v457
      %v661 = vunpack.c.l.b16 %v458
      %v662 = vunpack.c.l.b16 %v459
      %v663 = vunpack.c.l.b16 %v460
      %v664 = vunpack.c.l.b16 %v461
      %v665 = vunpack.c.l.b16 %v462
      %v666 = vunpack.c.l.b16 %v463
      %v667 = vunpack.c.l.b16 %v464
      %v668 = vunpack.c.l.b16 %v465
      %v669 = vunpack.c.l.b16 %v466
      %v670 = vunpack.c.l.b16 %v467
      %v671 = vunpack.c.l.b16 %v468
      %v672 = vunpack.c.l.b16 %v469
      %v673 = vunpack.c.l.b16 %v470
      %v674 = vunpack.c.l.b16 %v471
      %v675 = vunpack.c.l.b16 %v472
      %v676 = vunpack.c.l.b16 %v473
      %v677 = vunpack.c.l.b16 %v474
      %v678 = vunpack.c.l.b16 %v475
      %v679 = vunpack.c.l.b16 %v476
      %v680 = vunpack.c.l.b16 %v477
      %v681 = vunpack.c.l.b16 %v478
      %v682 = vunpack.c.l.b16 %v479
      %v683 = vunpack.c.l.b16 %v480
      %v684 = vunpack.c.l.b16 %v481
      %v685 = vunpack.c.l.b16 %v482
      %v686 = vunpack.c.l.b16 %v483
      %v687 = vunpack.c.l.b16 %v484
      %v688 = vunpack.c.l.b16 %v485
      %v689 = vunpack.c.l.b16 %v486
      %v690 = vunpack.c.l.b16 %v487
      %v691 = vunpack.c.l.b16 %v488
      %v692 = vunpack.c.l.b16 %v489
      %v693 = vunpack.c.l.b16 %v490
      %v694 = vunpack.c.l.b16 %v491
      %v695 = vunpack.c.l.b16 %v492
      %v696 = vunpack.c.l.b16 %v493
      %v697 = vunpack.c.l.b16 %v494
      %v698 = vunpack.c.l.b16 %v495
      %v699 = vunpack.c.l.b16 %v496
      %v700 = vunpack.c.l.b16 %v497
      %v701 = vunpack.c.l.b16 %v498
      %v702 = vpack.c.b16 %v605, %v604
      %v703 = vpack.c.b16 %v607, %v606
      %v704 = vpack.c.b16 %v609, %v608
      %v705 = vpack.c.b16 %v611, %v610
      %v706 = vpack.c.b16 %v613, %v612
      %v707 = vpack.c.b16 %v615, %v614
      %v708 = vpack.c.b16 %v617, %v616
      %v709 = vpack.c.b16 %v619, %v618
      %v710 = vpack.c.b16 %v621, %v620
      %v711 = vpack.c.b16 %v623, %v622
      %v712 = vpack.c.b16 %v625, %v624
      %v713 = vpack.c.b16 %v627, %v626
      %v714 = vpack.c.b16 %v629, %v628
      %v715 = vpack.c.b16 %v631, %v630
      %v716 = vpack.c.b16 %v633, %v632
      %v717 = vpack.c.b16 %v635, %v634
      %v718 = vpack.c.b16 %v637, %v636
      %v719 = vpack.c.b16 %v639, %v638
      %v720 = vpack.c.b16 %v641, %v640
      %v721 = vpack.c.b16 %v643, %v642
      %v722 = vpack.c.b16 %v645, %v644
      %v723 = vpack.c.b16 %v647, %v646
      %v724 = vpack.c.b16 %v649, %v648
      %v725 = vpack.c.b16 %v651, %v650
      %v726 = vpack.c.b16 %v653, %v652
      %v727 = vpack.c.b16 %v655, %v654
      %v728 = vpack.c.b16 %v657, %v656
      %v729 = vpack.c.b16 %v659, %v658
      %v730 = vpack.c.b16 %v661, %v660
      %v731 = vpack.c.b16 %v663, %v662
      %v732 = vpack.c.b16 %v665, %v664
      %v733 = vpack.c.b16 %v667, %v666
      %v734 = vpack.c.b16 %v669, %v668
      %v735 = vpack.c.b16 %v671, %v670
      %v736 = vpack.c.b16 %v673, %v672
      %v737 = vpack.c.b16 %v675, %v674
      %v738 = vpack.c.b16 %v677, %v676
      %v739 = vpack.c.b16 %v679, %v678
      %v740 = vpack.c.b16 %v681, %v680
      %v741 = vpack.c.b16 %v683, %v682
      %v742 = vpack.c.b16 %v685, %v684
      %v743 = vpack.c.b16 %v687, %v686
      %v744 = vpack.c.b16 %v689, %v688
      %v745 = vpack.c.b16 %v691, %v690
      %v746 = vpack.c.b16 %v693, %v692
      %v747 = vpack.c.b16 %v695, %v694
      %v748 = vpack.c.b16 %v697, %v696
      %v749 = vpack.c.b16 %v699, %v698
      %v750 = vpack.c.b16 %v701, %v700
      %vm800 = vcmask 130048
      %v802 = vsel %vm800, %v351, 0
      %v805 = vsel %vm800, %v358, 0
      %v808 = vsel %vm800, %v365, 0
      %v811 = vsel %vm800, %v372, 0
      %v814 = vsel %vm800, %v379, 0
      %v817 = vsel %vm800, %v386, 0
      %v820 = vsel %vm800, %v393, 0
      %v823 = vsel %vm800, %v400, 0
      %825 = vmatprep.subr.bf16.mxu0 0
      %826 = vmatpush1.bf16.msra.mxu0 %v709
      %827 = vmatprep.subr.bf16.mxu0 0
      %828 = vmatpush1.bf16.msra.mxu0 %v708
      %829 = vmatprep.subr.bf16.mxu0 0
      %830 = vmatpush1.bf16.msra.mxu0 %v707
      %831 = vmatprep.subr.bf16.mxu0 0
      %832 = vmatpush1.bf16.msra.mxu0 %v706
      %833 = vmatprep.subr.bf16.mxu0 0
      %834 = vmatpush1.bf16.msra.mxu0 %v705
      %835 = vmatprep.subr.bf16.mxu0 0
      %836 = vmatpush1.bf16.msra.mxu0 %v704
      %837 = vmatprep.subr.bf16.mxu0 0
      %838 = vmatpush1.bf16.msra.mxu0 %v703
      %839 = vmatprep.subr.bf16.mxu0 0
      %840 = vmatpush1.bf16.msra.mxu0 %v702
      %841 = vmatprep.subr.bf16.mxu0 0
      %842 = vmatpush2.bf16.msra.mxu0 %v717
      %843 = vmatprep.subr.bf16.mxu0 0
      %844 = vmatpush2.bf16.msra.mxu0 %v716
      %845 = vmatprep.subr.bf16.mxu0 0
      %846 = vmatpush2.bf16.msra.mxu0 %v715
      %847 = vmatprep.subr.bf16.mxu0 0
      %848 = vmatpush2.bf16.msra.mxu0 %v714
      %849 = vmatprep.subr.bf16.mxu0 0
      %850 = vmatpush2.bf16.msra.mxu0 %v713
      %851 = vmatprep.subr.bf16.mxu0 0
      %852 = vmatpush2.bf16.msra.mxu0 %v712
      %853 = vmatprep.subr.bf16.mxu0 0
      %854 = vmatpush2.bf16.msra.mxu0 %v711
      %855 = vmatprep.subr.bf16.mxu0 0
      %856 = vmatpush2.bf16.msra.mxu0 %v710
      %857 = vmatprep.mubr.bf16.mxu0 %v346
      %858 = vmatmul.mubr.bf16.gmra.mxu0 %v345
      %v859 = vpop.f32.mrf.mxu0
      %v860 = vadd.f32 %v504, %v859
      %v861 = vpop.f32.mrf.mxu0
      %v862 = vpop.f32.mrf.mxu0
      %v863 = vadd.f32 %v504, %v862
      %v864 = vpop.f32.mrf.mxu0
      %865 = vmatprep.mubr.bf16.mxu0 %v353
      %866 = vmatmul.mubr.bf16.gmra.mxu0 %v352
      %v867 = vpop.f32.mrf.mxu0
      %v868 = vadd.f32 %v504, %v867
      %v869 = vpop.f32.mrf.mxu0
      %v870 = vpop.f32.mrf.mxu0
      %v871 = vadd.f32 %v504, %v870
      %v872 = vpop.f32.mrf.mxu0
      %873 = vmatprep.mubr.bf16.mxu0 %v360
      %874 = vmatmul.mubr.bf16.gmra.mxu0 %v359
      %v875 = vpop.f32.mrf.mxu0
      %v876 = vadd.f32 %v504, %v875
      %v877 = vpop.f32.mrf.mxu0
      %v878 = vpop.f32.mrf.mxu0
      %v879 = vadd.f32 %v504, %v878
      %v880 = vpop.f32.mrf.mxu0
      %881 = vmatprep.mubr.bf16.mxu0 %v367
      %882 = vmatmul.mubr.bf16.gmra.mxu0 %v366
      %v883 = vpop.f32.mrf.mxu0
      %v884 = vadd.f32 %v504, %v883
      %v885 = vpop.f32.mrf.mxu0
      %v886 = vpop.f32.mrf.mxu0
      %v887 = vadd.f32 %v504, %v886
      %v888 = vpop.f32.mrf.mxu0
      %889 = vmatprep.mubr.bf16.mxu0 %v374
      %890 = vmatmul.mubr.bf16.gmra.mxu0 %v373
      %v891 = vpop.f32.mrf.mxu0
      %v892 = vadd.f32 %v504, %v891
      %v893 = vpop.f32.mrf.mxu0
      %v894 = vpop.f32.mrf.mxu0
      %v895 = vadd.f32 %v504, %v894
      %v896 = vpop.f32.mrf.mxu0
      %897 = vmatprep.mubr.bf16.mxu0 %v381
      %898 = vmatmul.mubr.bf16.gmra.mxu0 %v380
      %v899 = vpop.f32.mrf.mxu0
      %v900 = vadd.f32 %v504, %v899
      %v901 = vpop.f32.mrf.mxu0
      %v902 = vpop.f32.mrf.mxu0
      %v903 = vadd.f32 %v504, %v902
      %v904 = vpop.f32.mrf.mxu0
      %905 = vmatprep.mubr.bf16.mxu0 %v388
      %906 = vmatmul.mubr.bf16.gmra.mxu0 %v387
      %v907 = vpop.f32.mrf.mxu0
      %v908 = vadd.f32 %v504, %v907
      %v909 = vpop.f32.mrf.mxu0
      %v910 = vpop.f32.mrf.mxu0
      %v911 = vadd.f32 %v504, %v910
      %v912 = vpop.f32.mrf.mxu0
      %913 = vmatprep.mubr.bf16.mxu0 %v395
      %914 = vmatmul.mubr.bf16.gmra.mxu0 %v394
      %v915 = vpop.f32.mrf.mxu0
      %v916 = vadd.f32 %v504, %v915
      %v917 = vpop.f32.mrf.mxu0
      %v918 = vpop.f32.mrf.mxu0
      %v919 = vadd.f32 %v504, %v918
      %v920 = vpop.f32.mrf.mxu0
      %921 = vdwg.mxu0
      %922 = vmatprep.subr.bf16.mxu0 0
      %923 = vmatpush1.bf16.msra.mxu0 %v725
      %924 = vmatprep.subr.bf16.mxu0 0
      %925 = vmatpush1.bf16.msra.mxu0 %v724
      %926 = vmatprep.subr.bf16.mxu0 0
      %927 = vmatpush1.bf16.msra.mxu0 %v723
      %928 = vmatprep.subr.bf16.mxu0 0
      %929 = vmatpush1.bf16.msra.mxu0 %v722
      %930 = vmatprep.subr.bf16.mxu0 0
      %931 = vmatpush1.bf16.msra.mxu0 %v721
      %932 = vmatprep.subr.bf16.mxu0 0
      %933 = vmatpush1.bf16.msra.mxu0 %v720
      %934 = vmatprep.subr.bf16.mxu0 0
      %935 = vmatpush1.bf16.msra.mxu0 %v719
      %936 = vmatprep.subr.bf16.mxu0 0
      %937 = vmatpush1.bf16.msra.mxu0 %v718
      %938 = vmatprep.subr.bf16.mxu0 0
      %939 = vmatpush2.bf16.msra.mxu0 %v733
      %940 = vmatprep.subr.bf16.mxu0 0
      %941 = vmatpush2.bf16.msra.mxu0 %v732
      %942 = vmatprep.subr.bf16.mxu0 0
      %943 = vmatpush2.bf16.msra.mxu0 %v731
      %944 = vmatprep.subr.bf16.mxu0 0
      %945 = vmatpush2.bf16.msra.mxu0 %v730
      %946 = vmatprep.subr.bf16.mxu0 0
      %947 = vmatpush2.bf16.msra.mxu0 %v729
      %948 = vmatprep.subr.bf16.mxu0 0
      %949 = vmatpush2.bf16.msra.mxu0 %v728
      %950 = vmatprep.subr.bf16.mxu0 0
      %951 = vmatpush2.bf16.msra.mxu0 %v727
      %952 = vmatprep.subr.bf16.mxu0 0
      %953 = vmatpush2.bf16.msra.mxu0 %v726
      %954 = vmatprep.mubr.bf16.mxu0 %v348
      %955 = vmatmul.mubr.bf16.gmra.mxu0 %v347
      %v956 = vpop.f32.mrf.mxu0
      %v957 = vadd.f32 %v860, %v956
      %v958 = vpop.f32.mrf.mxu0
      %v959 = vpop.f32.mrf.mxu0
      %v960 = vadd.f32 %v863, %v959
      %v961 = vpop.f32.mrf.mxu0
      %962 = vmatprep.mubr.bf16.mxu0 %v355
      %963 = vmatmul.mubr.bf16.gmra.mxu0 %v354
      %v964 = vpop.f32.mrf.mxu0
      %v965 = vadd.f32 %v868, %v964
      %v966 = vpop.f32.mrf.mxu0
      %v967 = vpop.f32.mrf.mxu0
      %v968 = vadd.f32 %v871, %v967
      %v969 = vpop.f32.mrf.mxu0
      %970 = vmatprep.mubr.bf16.mxu0 %v362
      %971 = vmatmul.mubr.bf16.gmra.mxu0 %v361
      %v972 = vpop.f32.mrf.mxu0
      %v973 = vadd.f32 %v876, %v972
      %v974 = vpop.f32.mrf.mxu0
      %v975 = vpop.f32.mrf.mxu0
      %v976 = vadd.f32 %v879, %v975
      %v977 = vpop.f32.mrf.mxu0
      %978 = vmatprep.mubr.bf16.mxu0 %v369
      %979 = vmatmul.mubr.bf16.gmra.mxu0 %v368
      %v980 = vpop.f32.mrf.mxu0
      %v981 = vadd.f32 %v884, %v980
      %v982 = vpop.f32.mrf.mxu0
      %v983 = vpop.f32.mrf.mxu0
      %v984 = vadd.f32 %v887, %v983
      %v985 = vpop.f32.mrf.mxu0
      %986 = vmatprep.mubr.bf16.mxu0 %v376
      %987 = vmatmul.mubr.bf16.gmra.mxu0 %v375
      %v988 = vpop.f32.mrf.mxu0
      %v989 = vadd.f32 %v892, %v988
      %v990 = vpop.f32.mrf.mxu0
      %v991 = vpop.f32.mrf.mxu0
      %v992 = vadd.f32 %v895, %v991
      %v993 = vpop.f32.mrf.mxu0
      %994 = vmatprep.mubr.bf16.mxu0 %v383
      %995 = vmatmul.mubr.bf16.gmra.mxu0 %v382
      %v996 = vpop.f32.mrf.mxu0
      %v997 = vadd.f32 %v900, %v996
      %v998 = vpop.f32.mrf.mxu0
      %v999 = vpop.f32.mrf.mxu0
      %v1000 = vadd.f32 %v903, %v999
      %v1001 = vpop.f32.mrf.mxu0
      %1002 = vmatprep.mubr.bf16.mxu0 %v390
      %1003 = vmatmul.mubr.bf16.gmra.mxu0 %v389
      %v1004 = vpop.f32.mrf.mxu0
      %v1005 = vadd.f32 %v908, %v1004
      %v1006 = vpop.f32.mrf.mxu0
      %v1007 = vpop.f32.mrf.mxu0
      %v1008 = vadd.f32 %v911, %v1007
      %v1009 = vpop.f32.mrf.mxu0
      %1010 = vmatprep.mubr.bf16.mxu0 %v397
      %1011 = vmatmul.mubr.bf16.gmra.mxu0 %v396
      %v1012 = vpop.f32.mrf.mxu0
      %v1013 = vadd.f32 %v916, %v1012
      %v1014 = vpop.f32.mrf.mxu0
      %v1015 = vpop.f32.mrf.mxu0
      %v1016 = vadd.f32 %v919, %v1015
      %v1017 = vpop.f32.mrf.mxu0
      %1018 = vdwg.mxu0
      %1019 = vmatprep.subr.bf16.mxu0 0
      %1020 = vmatpush1.bf16.msra.mxu0 %v741
      %1021 = vmatprep.subr.bf16.mxu0 0
      %1022 = vmatpush1.bf16.msra.mxu0 %v740
      %1023 = vmatprep.subr.bf16.mxu0 0
      %1024 = vmatpush1.bf16.msra.mxu0 %v739
      %1025 = vmatprep.subr.bf16.mxu0 0
      %1026 = vmatpush1.bf16.msra.mxu0 %v738
      %1027 = vmatprep.subr.bf16.mxu0 0
      %1028 = vmatpush1.bf16.msra.mxu0 %v737
      %1029 = vmatprep.subr.bf16.mxu0 0
      %1030 = vmatpush1.bf16.msra.mxu0 %v736
      %1031 = vmatprep.subr.bf16.mxu0 0
      %1032 = vmatpush1.bf16.msra.mxu0 %v735
      %1033 = vmatprep.subr.bf16.mxu0 0
      %1034 = vmatpush1.bf16.msra.mxu0 %v734
      %1035 = vmatprep.subr.bf16.mxu0 0
      %1036 = vmatpush2.bf16.msra.mxu0 %v749
      %1037 = vmatprep.subr.bf16.mxu0 0
      %1038 = vmatpush2.bf16.msra.mxu0 %v748
      %1039 = vmatprep.subr.bf16.mxu0 0
      %1040 = vmatpush2.bf16.msra.mxu0 %v747
      %1041 = vmatprep.subr.bf16.mxu0 0
      %1042 = vmatpush2.bf16.msra.mxu0 %v746
      %1043 = vmatprep.subr.bf16.mxu0 0
      %1044 = vmatpush2.bf16.msra.mxu0 %v745
      %1045 = vmatprep.subr.bf16.mxu0 0
      %1046 = vmatpush2.bf16.msra.mxu0 %v744
      %1047 = vmatprep.subr.bf16.mxu0 0
      %1048 = vmatpush2.bf16.msra.mxu0 %v743
      %1049 = vmatprep.subr.bf16.mxu0 0
      %1050 = vmatpush2.bf16.msra.mxu0 %v742
      %1051 = vmatprep.mubr.bf16.mxu0 %v350
      %1052 = vmatmul.mubr.bf16.gmra.mxu0 %v349
      %v1053 = vpop.f32.mrf.mxu0
      %v1054 = vadd.f32 %v957, %v1053
      %v1055 = vpop.f32.mrf.mxu0
      %v1056 = vpop.f32.mrf.mxu0
      %v1057 = vadd.f32 %v960, %v1056
      %v1058 = vpop.f32.mrf.mxu0
      %1059 = vmatprep.mubr.bf16.mxu0 %v357
      %1060 = vmatmul.mubr.bf16.gmra.mxu0 %v356
      %v1061 = vpop.f32.mrf.mxu0
      %v1062 = vadd.f32 %v965, %v1061
      %v1063 = vpop.f32.mrf.mxu0
      %v1064 = vpop.f32.mrf.mxu0
      %v1065 = vadd.f32 %v968, %v1064
      %v1066 = vpop.f32.mrf.mxu0
      %1067 = vmatprep.mubr.bf16.mxu0 %v364
      %1068 = vmatmul.mubr.bf16.gmra.mxu0 %v363
      %v1069 = vpop.f32.mrf.mxu0
      %v1070 = vadd.f32 %v973, %v1069
      %v1071 = vpop.f32.mrf.mxu0
      %v1072 = vpop.f32.mrf.mxu0
      %v1073 = vadd.f32 %v976, %v1072
      %v1074 = vpop.f32.mrf.mxu0
      %1075 = vmatprep.mubr.bf16.mxu0 %v371
      %1076 = vmatmul.mubr.bf16.gmra.mxu0 %v370
      %v1077 = vpop.f32.mrf.mxu0
      %v1078 = vadd.f32 %v981, %v1077
      %v1079 = vpop.f32.mrf.mxu0
      %v1080 = vpop.f32.mrf.mxu0
      %v1081 = vadd.f32 %v984, %v1080
      %v1082 = vpop.f32.mrf.mxu0
      %1083 = vmatprep.mubr.bf16.mxu0 %v378
      %1084 = vmatmul.mubr.bf16.gmra.mxu0 %v377
      %v1085 = vpop.f32.mrf.mxu0
      %v1086 = vadd.f32 %v989, %v1085
      %v1087 = vpop.f32.mrf.mxu0
      %v1088 = vpop.f32.mrf.mxu0
      %v1089 = vadd.f32 %v992, %v1088
      %v1090 = vpop.f32.mrf.mxu0
      %1091 = vmatprep.mubr.bf16.mxu0 %v385
      %1092 = vmatmul.mubr.bf16.gmra.mxu0 %v384
      %v1093 = vpop.f32.mrf.mxu0
      %v1094 = vadd.f32 %v997, %v1093
      %v1095 = vpop.f32.mrf.mxu0
      %v1096 = vpop.f32.mrf.mxu0
      %v1097 = vadd.f32 %v1000, %v1096
      %v1098 = vpop.f32.mrf.mxu0
      %1099 = vmatprep.mubr.bf16.mxu0 %v392
      %1100 = vmatmul.mubr.bf16.gmra.mxu0 %v391
      %v1101 = vpop.f32.mrf.mxu0
      %v1102 = vadd.f32 %v1005, %v1101
      %v1103 = vpop.f32.mrf.mxu0
      %v1104 = vpop.f32.mrf.mxu0
      %v1105 = vadd.f32 %v1008, %v1104
      %v1106 = vpop.f32.mrf.mxu0
      %1107 = vmatprep.mubr.bf16.mxu0 %v399
      %1108 = vmatmul.mubr.bf16.gmra.mxu0 %v398
      %v1109 = vpop.f32.mrf.mxu0
      %v1110 = vadd.f32 %v1013, %v1109
      %v1111 = vpop.f32.mrf.mxu0
      %v1112 = vpop.f32.mrf.mxu0
      %v1113 = vadd.f32 %v1016, %v1112
      %v1114 = vpop.f32.mrf.mxu0
      %1115 = vdwg.mxu0
      %1116 = vmatprep.subr.bf16.mxu0 0
      %1117 = vmatpush1.bf16.msra.mxu0 0
      %1118 = vmatprep.subr.bf16.mxu0 0
      %1119 = vmatpush1.bf16.msra.mxu0 0
      %1120 = vmatprep.subr.bf16.mxu0 0
      %1121 = vmatpush1.bf16.msra.mxu0 0
      %1122 = vmatprep.subr.bf16.mxu0 0
      %1123 = vmatpush1.bf16.msra.mxu0 0
      %1124 = vmatprep.subr.bf16.mxu0 0
      %1125 = vmatpush1.bf16.msra.mxu0 0
      %1126 = vmatprep.subr.bf16.mxu0 0
      %1127 = vmatpush1.bf16.msra.mxu0 0
      %1128 = vmatprep.subr.bf16.mxu0 0
      %1129 = vmatpush1.bf16.msra.mxu0 0
      %1130 = vmatprep.subr.bf16.mxu0 0
      %1131 = vmatpush1.bf16.msra.mxu0 %v750
      %1132 = vmatprep.subr.bf16.mxu0 0
      %1133 = vmatpush2.bf16.msra.mxu0 0
      %1134 = vmatprep.subr.bf16.mxu0 0
      %1135 = vmatpush2.bf16.msra.mxu0 0
      %1136 = vmatprep.subr.bf16.mxu0 0
      %1137 = vmatpush2.bf16.msra.mxu0 0
      %1138 = vmatprep.subr.bf16.mxu0 0
      %1139 = vmatpush2.bf16.msra.mxu0 0
      %1140 = vmatprep.subr.bf16.mxu0 0
      %1141 = vmatpush2.bf16.msra.mxu0 0
      %1142 = vmatprep.subr.bf16.mxu0 0
      %1143 = vmatpush2.bf16.msra.mxu0 0
      %1144 = vmatprep.subr.bf16.mxu0 0
      %1145 = vmatpush2.bf16.msra.mxu0 0
      %1146 = vmatprep.subr.bf16.mxu0 0
      %1147 = vmatpush2.bf16.msra.mxu0 0
      %1148 = vmatprep.mubr.bf16.mxu0 0
      %1149 = vmatmul.mubr.bf16.gmra.mxu0 %v802
      %v1150 = vpop.f32.mrf.mxu0
      %v1151 = vadd.f32 %v1054, %v1150
      %v1152 = vpop.f32.mrf.mxu0
      %v1153 = vpop.f32.mrf.mxu0
      %v1154 = vadd.f32 %v1057, %v1153
      %v1155 = vpop.f32.mrf.mxu0
      %1156 = vmatprep.mubr.bf16.mxu0 0
      %1157 = vmatmul.mubr.bf16.gmra.mxu0 %v805
      %v1158 = vpop.f32.mrf.mxu0
      %v1159 = vadd.f32 %v1062, %v1158
      %v1160 = vpop.f32.mrf.mxu0
      %v1161 = vpop.f32.mrf.mxu0
      %v1162 = vadd.f32 %v1065, %v1161
      %v1163 = vpop.f32.mrf.mxu0
      %1164 = vmatprep.mubr.bf16.mxu0 0
      %1165 = vmatmul.mubr.bf16.gmra.mxu0 %v808
      %v1166 = vpop.f32.mrf.mxu0
      %v1167 = vadd.f32 %v1070, %v1166
      %v1168 = vpop.f32.mrf.mxu0
      %v1169 = vpop.f32.mrf.mxu0
      %v1170 = vadd.f32 %v1073, %v1169
      %v1171 = vpop.f32.mrf.mxu0
      %1172 = vmatprep.mubr.bf16.mxu0 0
      %1173 = vmatmul.mubr.bf16.gmra.mxu0 %v811
      %v1174 = vpop.f32.mrf.mxu0
      %v1175 = vadd.f32 %v1078, %v1174
      %v1176 = vpop.f32.mrf.mxu0
      %v1177 = vpop.f32.mrf.mxu0
      %v1178 = vadd.f32 %v1081, %v1177
      %v1179 = vpop.f32.mrf.mxu0
      %1180 = vmatprep.mubr.bf16.mxu0 0
      %1181 = vmatmul.mubr.bf16.gmra.mxu0 %v814
      %v1182 = vpop.f32.mrf.mxu0
      %v1183 = vadd.f32 %v1086, %v1182
      %v1184 = vpop.f32.mrf.mxu0
      %v1185 = vpop.f32.mrf.mxu0
      %v1186 = vadd.f32 %v1089, %v1185
      %v1187 = vpop.f32.mrf.mxu0
      %1188 = vmatprep.mubr.bf16.mxu0 0
      %1189 = vmatmul.mubr.bf16.gmra.mxu0 %v817
      %v1190 = vpop.f32.mrf.mxu0
      %v1191 = vadd.f32 %v1094, %v1190
      %v1192 = vpop.f32.mrf.mxu0
      %v1193 = vpop.f32.mrf.mxu0
      %v1194 = vadd.f32 %v1097, %v1193
      %v1195 = vpop.f32.mrf.mxu0
      %1196 = vmatprep.mubr.bf16.mxu0 0
      %1197 = vmatmul.mubr.bf16.gmra.mxu0 %v820
      %v1198 = vpop.f32.mrf.mxu0
      %v1199 = vadd.f32 %v1102, %v1198
      %v1200 = vpop.f32.mrf.mxu0
      %v1201 = vpop.f32.mrf.mxu0
      %v1202 = vadd.f32 %v1105, %v1201
      %v1203 = vpop.f32.mrf.mxu0
      %1204 = vmatprep.mubr.bf16.mxu0 0
      %1205 = vmatmul.mubr.bf16.gmra.mxu0 %v823
      %v1206 = vpop.f32.mrf.mxu0
      %v1207 = vadd.f32 %v1110, %v1206
      %v1208 = vpop.f32.mrf.mxu0
      %v1209 = vpop.f32.mrf.mxu0
      %v1210 = vadd.f32 %v1113, %v1209
      %v1211 = vpop.f32.mrf.mxu0
      %1212 = vdwg.mxu0
      %vm1213 = vcmp.gt.f32.partialorder %v1151, 0.0
      %vm1214 = vcmp.gt.f32.partialorder %v1154, 0.0
      %vm1215 = vcmp.gt.f32.partialorder %v1159, 0.0
      %vm1216 = vcmp.gt.f32.partialorder %v1162, 0.0
      %vm1217 = vcmp.gt.f32.partialorder %v1167, 0.0
      %vm1218 = vcmp.gt.f32.partialorder %v1170, 0.0
      %vm1219 = vcmp.gt.f32.partialorder %v1175, 0.0
      %vm1220 = vcmp.gt.f32.partialorder %v1178, 0.0
      %vm1221 = vcmp.gt.f32.partialorder %v1183, 0.0
      %vm1222 = vcmp.gt.f32.partialorder %v1186, 0.0
      %vm1223 = vcmp.gt.f32.partialorder %v1191, 0.0
      %vm1224 = vcmp.gt.f32.partialorder %v1194, 0.0
      %vm1225 = vcmp.gt.f32.partialorder %v1199, 0.0
      %vm1226 = vcmp.gt.f32.partialorder %v1202, 0.0
      %vm1227 = vcmp.gt.f32.partialorder %v1207, 0.0
      %vm1228 = vcmp.gt.f32.partialorder %v1210, 0.0
      %v1229 = vmul.f32 %v1151, 0.1
      %v1230 = vmul.f32 %v1154, 0.1
      %v1231 = vmul.f32 %v1159, 0.1
      %v1232 = vmul.f32 %v1162, 0.1
      %v1233 = vmul.f32 %v1167, 0.1
      %v1234 = vmul.f32 %v1170, 0.1
      %v1235 = vmul.f32 %v1175, 0.1
      %v1236 = vmul.f32 %v1178, 0.1
      %v1237 = vmul.f32 %v1183, 0.1
      %v1238 = vmul.f32 %v1186, 0.1
      %v1239 = vmul.f32 %v1191, 0.1
      %v1240 = vmul.f32 %v1194, 0.1
      %v1241 = vmul.f32 %v1199, 0.1
      %v1242 = vmul.f32 %v1202, 0.1
      %v1243 = vmul.f32 %v1207, 0.1
      %v1244 = vmul.f32 %v1210, 0.1
      %v1245 = vsel %vm1213, %v1151, %v1229
      %v1246 = vsel %vm1214, %v1154, %v1230
      %v1247 = vsel %vm1215, %v1159, %v1231
      %v1248 = vsel %vm1216, %v1162, %v1232
      %v1249 = vsel %vm1217, %v1167, %v1233
      %v1250 = vsel %vm1218, %v1170, %v1234
      %v1251 = vsel %vm1219, %v1175, %v1235
      %v1252 = vsel %vm1220, %v1178, %v1236
      %v1253 = vsel %vm1221, %v1183, %v1237
      %v1254 = vsel %vm1222, %v1186, %v1238
      %v1255 = vsel %vm1223, %v1191, %v1239
      %v1256 = vsel %vm1224, %v1194, %v1240
      %v1257 = vsel %vm1225, %v1199, %v1241
      %v1258 = vsel %vm1226, %v1202, %v1242
      %v1259 = vsel %vm1227, %v1207, %v1243
      %v1260 = vsel %vm1228, %v1210, %v1244
      %v1261 = vld [vmem:[%s3] sm:$0x1]
      %v1263 = vlaneseq
      %v1264 = vshrl.u32 %v1263, 7
      %v1265 = vsub.s32 0, %v1264
      %v1266 = vrot.slane %v1261, %v1265
      %v1268 = vmul.f32 %v1245, %v1266
      %v1269 = vmul.f32 %v1246, %v1266
      %v1270 = vmul.f32 %v1247, %v1266
      %v1271 = vmul.f32 %v1248, %v1266
      %v1272 = vmul.f32 %v1249, %v1266
      %v1273 = vmul.f32 %v1250, %v1266
      %v1274 = vmul.f32 %v1251, %v1266
      %v1275 = vmul.f32 %v1252, %v1266
      %v1276 = vmul.f32 %v1253, %v1266
      %v1277 = vmul.f32 %v1254, %v1266
      %v1278 = vmul.f32 %v1255, %v1266
      %v1279 = vmul.f32 %v1256, %v1266
      %v1280 = vmul.f32 %v1257, %v1266
      %v1281 = vmul.f32 %v1258, %v1266
      %v1282 = vmul.f32 %v1259, %v1266
      %v1283 = vmul.f32 %v1260, %v1266
      %1284 = vadd.xlane.f32.xlu0 %v1268
      %v1285 = vpop.xlane.xlu0 %1284
      %1286 = vadd.xlane.f32.xlu0 %v1269
      %v1287 = vpop.xlane.xlu0 %1286
      %1288 = vadd.xlane.f32.xlu0 %v1270
      %v1289 = vpop.xlane.xlu0 %1288
      %1290 = vadd.xlane.f32.xlu0 %v1271
      %v1291 = vpop.xlane.xlu0 %1290
      %1292 = vadd.xlane.f32.xlu0 %v1272
      %v1293 = vpop.xlane.xlu0 %1292
      %1294 = vadd.xlane.f32.xlu0 %v1273
      %v1295 = vpop.xlane.xlu0 %1294
      %1296 = vadd.xlane.f32.xlu0 %v1274
      %v1297 = vpop.xlane.xlu0 %1296
      %1298 = vadd.xlane.f32.xlu0 %v1275
      %v1299 = vpop.xlane.xlu0 %1298
      %1300 = vadd.xlane.f32.xlu0 %v1276
      %v1301 = vpop.xlane.xlu0 %1300
      %1302 = vadd.xlane.f32.xlu0 %v1277
      %v1303 = vpop.xlane.xlu0 %1302
      %1304 = vadd.xlane.f32.xlu0 %v1278
      %v1305 = vpop.xlane.xlu0 %1304
      %1306 = vadd.xlane.f32.xlu0 %v1279
      %v1307 = vpop.xlane.xlu0 %1306
      %1308 = vadd.xlane.f32.xlu0 %v1280
      %v1309 = vpop.xlane.xlu0 %1308
      %1310 = vadd.xlane.f32.xlu0 %v1281
      %v1311 = vpop.xlane.xlu0 %1310
      %1312 = vadd.xlane.f32.xlu0 %v1282
      %v1313 = vpop.xlane.xlu0 %1312
      %1314 = vadd.xlane.f32.xlu0 %v1283
      %v1315 = vpop.xlane.xlu0 %1314
      %s1316 = sld [smem:[#allocation2]]
      %v1317 = vstv %s1316
      %v1318 = vadd.f32 %v1285, %v1317
      %v1319 = vadd.f32 %v1287, %v1317
      %v1320 = vadd.f32 %v1289, %v1317
      %v1321 = vadd.f32 %v1291, %v1317
      %v1322 = vadd.f32 %v1293, %v1317
      %v1323 = vadd.f32 %v1295, %v1317
      %v1324 = vadd.f32 %v1297, %v1317
      %v1325 = vadd.f32 %v1299, %v1317
      %v1326 = vadd.f32 %v1301, %v1317
      %v1327 = vadd.f32 %v1303, %v1317
      %v1328 = vadd.f32 %v1305, %v1317
      %v1329 = vadd.f32 %v1307, %v1317
      %v1330 = vadd.f32 %v1309, %v1317
      %v1331 = vadd.f32 %v1311, %v1317
      %v1332 = vadd.f32 %v1313, %v1317
      %v1333 = vadd.f32 %v1315, %v1317
      %v1334 = vand.u32 2147483647, %v1318
      %v1335 = vand.u32 2147483647, %v1319
      %v1336 = vand.u32 2147483647, %v1320
      %v1337 = vand.u32 2147483647, %v1321
      %v1338 = vand.u32 2147483647, %v1322
      %v1339 = vand.u32 2147483647, %v1323
      %v1340 = vand.u32 2147483647, %v1324
      %v1341 = vand.u32 2147483647, %v1325
      %v1342 = vand.u32 2147483647, %v1326
      %v1343 = vand.u32 2147483647, %v1327
      %v1344 = vand.u32 2147483647, %v1328
      %v1345 = vand.u32 2147483647, %v1329
      %v1346 = vand.u32 2147483647, %v1330
      %v1347 = vand.u32 2147483647, %v1331
      %v1348 = vand.u32 2147483647, %v1332
      %v1349 = vand.u32 2147483647, %v1333
      %v1350 = vsub.f32 0.0, %v1334
      %v1351 = vsub.f32 0.0, %v1335
      %v1352 = vsub.f32 0.0, %v1336
      %v1353 = vsub.f32 0.0, %v1337
      %v1354 = vsub.f32 0.0, %v1338
      %v1355 = vsub.f32 0.0, %v1339
      %v1356 = vsub.f32 0.0, %v1340
      %v1357 = vsub.f32 0.0, %v1341
      %v1358 = vsub.f32 0.0, %v1342
      %v1359 = vsub.f32 0.0, %v1343
      %v1360 = vsub.f32 0.0, %v1344
      %v1361 = vsub.f32 0.0, %v1345
      %v1362 = vsub.f32 0.0, %v1346
      %v1363 = vsub.f32 0.0, %v1347
      %v1364 = vsub.f32 0.0, %v1348
      %v1365 = vsub.f32 0.0, %v1349
      %v1366 = vmul.f32 %v1350, 1.442695
      %v1367 = vpow.pop %v1366
      %v1368 = vmul.f32 %v1351, 1.442695
      %v1369 = vpow.pop %v1368
      %v1370 = vmul.f32 %v1352, 1.442695
      %v1371 = vpow.pop %v1370
      %v1372 = vmul.f32 %v1353, 1.442695
      %v1373 = vpow.pop %v1372
      %v1374 = vmul.f32 %v1354, 1.442695
      %v1375 = vpow.pop %v1374
      %v1376 = vmul.f32 %v1355, 1.442695
      %v1377 = vpow.pop %v1376
      %v1378 = vmul.f32 %v1356, 1.442695
      %v1379 = vpow.pop %v1378
      %v1380 = vmul.f32 %v1357, 1.442695
      %v1381 = vpow.pop %v1380
      %v1382 = vmul.f32 %v1358, 1.442695
      %v1383 = vpow.pop %v1382
      %v1384 = vmul.f32 %v1359, 1.442695
      %v1385 = vpow.pop %v1384
      %v1386 = vmul.f32 %v1360, 1.442695
      %v1387 = vpow.pop %v1386
      %v1388 = vmul.f32 %v1361, 1.442695
      %v1389 = vpow.pop %v1388
      %v1390 = vmul.f32 %v1362, 1.442695
      %v1391 = vpow.pop %v1390
      %v1392 = vmul.f32 %v1363, 1.442695
      %v1393 = vpow.pop %v1392
      %v1394 = vmul.f32 %v1364, 1.442695
      %v1395 = vpow.pop %v1394
      %v1396 = vmul.f32 %v1365, 1.442695
      %v1397 = vpow.pop %v1396
      %v1398 = vadd.f32 %v1367, 1.0
      %v1399 = vadd.f32 %v1369, 1.0
      %v1400 = vadd.f32 %v1371, 1.0
      %v1401 = vadd.f32 %v1373, 1.0
      %v1402 = vadd.f32 %v1375, 1.0
      %v1403 = vadd.f32 %v1377, 1.0
      %v1404 = vadd.f32 %v1379, 1.0
      %v1405 = vadd.f32 %v1381, 1.0
      %v1406 = vadd.f32 %v1383, 1.0
      %v1407 = vadd.f32 %v1385, 1.0
      %v1408 = vadd.f32 %v1387, 1.0
      %v1409 = vadd.f32 %v1389, 1.0
      %v1410 = vadd.f32 %v1391, 1.0
      %v1411 = vadd.f32 %v1393, 1.0
      %v1412 = vadd.f32 %v1395, 1.0
      %v1413 = vadd.f32 %v1397, 1.0
      %v1414 = vrcp.pop %v1398
      %v1415 = vrcp.pop %v1399
      %v1416 = vrcp.pop %v1400
      %v1417 = vrcp.pop %v1401
      %v1418 = vrcp.pop %v1402
      %v1419 = vrcp.pop %v1403
      %v1420 = vrcp.pop %v1404
      %v1421 = vrcp.pop %v1405
      %v1422 = vrcp.pop %v1406
      %v1423 = vrcp.pop %v1407
      %v1424 = vrcp.pop %v1408
      %v1425 = vrcp.pop %v1409
      %v1426 = vrcp.pop %v1410
      %v1427 = vrcp.pop %v1411
      %v1428 = vrcp.pop %v1412
      %v1429 = vrcp.pop %v1413
      %vm1430 = vcmp.ge.f32.partialorder %v1318, 0.0
      %vm1431 = vcmp.ge.f32.partialorder %v1319, 0.0
      %vm1432 = vcmp.ge.f32.partialorder %v1320, 0.0
      %vm1433 = vcmp.ge.f32.partialorder %v1321, 0.0
      %vm1434 = vcmp.ge.f32.partialorder %v1322, 0.0
      %vm1435 = vcmp.ge.f32.partialorder %v1323, 0.0
      %vm1436 = vcmp.ge.f32.partialorder %v1324, 0.0
      %vm1437 = vcmp.ge.f32.partialorder %v1325, 0.0
      %vm1438 = vcmp.ge.f32.partialorder %v1326, 0.0
      %vm1439 = vcmp.ge.f32.partialorder %v1327, 0.0
      %vm1440 = vcmp.ge.f32.partialorder %v1328, 0.0
      %vm1441 = vcmp.ge.f32.partialorder %v1329, 0.0
      %vm1442 = vcmp.ge.f32.partialorder %v1330, 0.0
      %vm1443 = vcmp.ge.f32.partialorder %v1331, 0.0
      %vm1444 = vcmp.ge.f32.partialorder %v1332, 0.0
      %vm1445 = vcmp.ge.f32.partialorder %v1333, 0.0
      %v1446 = vmul.f32 %v1367, %v1414
      %v1447 = vmul.f32 %v1369, %v1415
      %v1448 = vmul.f32 %v1371, %v1416
      %v1449 = vmul.f32 %v1373, %v1417
      %v1450 = vmul.f32 %v1375, %v1418
      %v1451 = vmul.f32 %v1377, %v1419
      %v1452 = vmul.f32 %v1379, %v1420
      %v1453 = vmul.f32 %v1381, %v1421
      %v1454 = vmul.f32 %v1383, %v1422
      %v1455 = vmul.f32 %v1385, %v1423
      %v1456 = vmul.f32 %v1387, %v1424
      %v1457 = vmul.f32 %v1389, %v1425
      %v1458 = vmul.f32 %v1391, %v1426
      %v1459 = vmul.f32 %v1393, %v1427
      %v1460 = vmul.f32 %v1395, %v1428
      %v1461 = vmul.f32 %v1397, %v1429
      %v1462 = vsel %vm1430, %v1414, %v1446
      %v1463 = vsel %vm1431, %v1415, %v1447
      %v1464 = vsel %vm1432, %v1416, %v1448
      %v1465 = vsel %vm1433, %v1417, %v1449
      %v1466 = vsel %vm1434, %v1418, %v1450
      %v1467 = vsel %vm1435, %v1419, %v1451
      %v1468 = vsel %vm1436, %v1420, %v1452
      %v1469 = vsel %vm1437, %v1421, %v1453
      %v1470 = vsel %vm1438, %v1422, %v1454
      %v1471 = vsel %vm1439, %v1423, %v1455
      %v1472 = vsel %vm1440, %v1424, %v1456
      %v1473 = vsel %vm1441, %v1425, %v1457
      %v1474 = vsel %vm1442, %v1426, %v1458
      %v1475 = vsel %vm1443, %v1427, %v1459
      %v1476 = vsel %vm1444, %v1428, %v1460
      %v1477 = vsel %vm1445, %v1429, %v1461
      %vm1478 = vcmask 7168
      %1479 = vst.msk [vmem:[%s230] sm:$0xff] %vm1478, %v1462
      %1480 = vst.msk [vmem:[%s230 + $0x8] sm:$0xff] %vm1478, %v1463
      %1481 = vst.msk [vmem:[%s230 + $0x10] sm:$0xff] %vm1478, %v1464
      %1482 = vst.msk [vmem:[%s230 + $0x18] sm:$0xff] %vm1478, %v1465
      %1483 = vst.msk [vmem:[%s230 + $0x20] sm:$0xff] %vm1478, %v1466
      %1484 = vst.msk [vmem:[%s230 + $0x28] sm:$0xff] %vm1478, %v1467
      %1485 = vst.msk [vmem:[%s230 + $0x30] sm:$0xff] %vm1478, %v1468
      %1486 = vst.msk [vmem:[%s230 + $0x38] sm:$0xff] %vm1478, %v1469
      %1487 = vst.msk [vmem:[%s230 + $0x40] sm:$0xff] %vm1478, %v1470
      %1488 = vst.msk [vmem:[%s230 + $0x48] sm:$0xff] %vm1478, %v1471
      %1489 = vst.msk [vmem:[%s230 + $0x50] sm:$0xff] %vm1478, %v1472
      %1490 = vst.msk [vmem:[%s230 + $0x58] sm:$0xff] %vm1478, %v1473
      %1491 = vst.msk [vmem:[%s230 + $0x60] sm:$0xff] %vm1478, %v1474
      %1492 = vst.msk [vmem:[%s230 + $0x68] sm:$0xff] %vm1478, %v1475
      %1493 = vst.msk [vmem:[%s230 + $0x70] sm:$0xff] %vm1478, %v1476
      %1494 = vst.msk [vmem:[%s230 + $0x78] sm:$0xff] %vm1478, %v1477
      %s1495 = smul.u32 16, %s17
      %p1496 = scmp.lt.s32.totalorder %s1495, 31
      %s1497 = scalar_select %p1496, %s1495, 31
      %s1498 = smul.addr %s1497, 8
      %s1499 = scalar_lea.vmem %s5, %s1498
      // Predicated region
      $region41: #{discriminator_forward.1} parent=39 // pred_check
        %p1500 = pneg %p145
      $region42: #{discriminator_forward.1} parent=39 // pred_check_branch
        %1502 = sbr.rel (%p1500) target = $region44
      $region43: #{discriminator_forward.1} parent=39 // pred_region
        %s1503 = smul.u32 16, %s17
      $region44: #{discriminator_forward.1} parent=39 // pred_fallthru
        _
    $region40: #{discriminator_forward.1} parent=5 // pred_fallthru
      _
    %p1504 = scmp.le.s32.totalorder 2, %s12
    // Predicated region
    $region45: #{discriminator_forward.1} parent=5 // pred_check
      %p1505 = pneg %p1504
    $region46: #{discriminator_forward.1} parent=5 // pred_check_branch
      %1507 = sbr.rel (%p1505) target = $region48
    $region47: #{discriminator_forward.1} parent=5 // pred_region
      %s1508 = ssub.s32 %s12, 2
      // Predicated region
      $region49: #{discriminator_forward.1} parent=47 // pred_check
        %p1509 = pneg %p151
      $region50: #{discriminator_forward.1} parent=47 // pred_check_branch
        %1511 = sbr.rel (%p1509) target = $region52
      $region51: #{discriminator_forward.1} parent=47 // pred_region
        %s1512 = smul.u32 16, %s18
        %p1513 = scmp.lt.s32.totalorder %s1512, 31
        %s1514 = scalar_select %p1513, %s1512, 31
        %s1515 = smul.addr %s1514, 8
        %s1516 = scalar_lea.vmem %s5, %s1515
      $region52: #{discriminator_forward.1} parent=47 // pred_fallthru
        _
    $region48: #{discriminator_forward.1} parent=5 // pred_fallthru
      _
  $region6: #{discriminator_forward.1} parent=0 // loop_footer
    %s16 = sadd.s32 1, %s12
  $region7: #{discriminator_forward.1} parent=0 // loop_footer_branch
    %11 = sbr.rel target = $region3
  $region8: #{discriminator_forward.1} parent=0 // loop_exit
    _

</llo_original>
